<compile_context>
chip_gen: v5e
topology: v5e:2x2
jax: 0.10.0
libtpu: 0.0.40
codegen_flags: <defaults>
</compile_context>

<pallas_src>
from typing import NamedTuple, Optional

import jax
import jax.numpy as jnp
from jax.experimental import pallas as pl
from jax.experimental.pallas import tpu as pltpu


def _round_up(a: int, b: int) -> int:
    return (a + b - 1) // b * b


# -----------------------------------------------------------------------------
# Kernels
# -----------------------------------------------------------------------------
def _lora_kernel_f32_out(x_ref, wt_ref, bias_ref, u_ref, bt_ref, o_ref):
    """f32 output: accumulate x @ W^T directly into the resident output block."""
    k = pl.program_id(2)

    @pl.when(k == 0)
    def _init():
        o_ref[...] = jnp.zeros_like(o_ref)

    o_ref[...] += jnp.dot(x_ref[...], wt_ref[...],
                          preferred_element_type=jnp.float32)

    @pl.when(k == pl.num_programs(2) - 1)
    def _epilogue():
        o_ref[...] += bias_ref[...] + jnp.dot(
            u_ref[...], bt_ref[...], preferred_element_type=jnp.float32)


def _lora_kernel_acc(x_ref, wt_ref, bias_ref, u_ref, bt_ref, o_ref, acc_ref):
    """Non-f32 output: accumulate into f32 scratch, cast once in the epilogue."""
    k = pl.program_id(2)

    @pl.when(k == 0)
    def _init():
        acc_ref[...] = jnp.zeros_like(acc_ref)

    acc_ref[...] += jnp.dot(x_ref[...], wt_ref[...],
                            preferred_element_type=jnp.float32)

    @pl.when(k == pl.num_programs(2) - 1)
    def _epilogue():
        out = acc_ref[...] + bias_ref[...] + jnp.dot(
            u_ref[...], bt_ref[...], preferred_element_type=jnp.float32)
        o_ref[...] = out.astype(o_ref.dtype)


# -----------------------------------------------------------------------------
# One-time preparation of the frozen tensors
# -----------------------------------------------------------------------------
class LoRAParams(NamedTuple):
    wt: jax.Array      # (Kp, Np)      frozen W^T, padded, compute dtype
    bias2d: jax.Array  # (1, Np)       f32 bias (zeros if no bias)
    at: jax.Array      # (d_in, r_pad) A^T, lane-padded to 128, compute dtype
    bt: jax.Array      # (r_pad, Np)   (alpha * B)^T, padded, compute dtype
    d_in: int
    d_out: int
    tk: int
    tn: int


def prepare_lora_params(weight, bias, A, B, *, alpha=1.0,
                        compute_dtype=jnp.bfloat16, tn=1024, tk=512):
    """Transpose, fold alpha into B^T, pad, and cast the frozen tensors ONCE."""
    d_out, d_in = weight.shape
    r = A.shape[0]

    # Clamp tiles to the (128-padded) problem dims; keep lane-dense tiles.
    tk = min(tk, _round_up(d_in, 128))
    tn = min(tn, _round_up(d_out, 128))
    # Keep >= 2 N tiles when the output dim allows it, so a megacore chip
    # (v7x: 2 TCs sharded over the parallel grid axes) never serializes on a
    # single (1, 1, K) grid for small-M calls.
    if tn == _round_up(d_out, 128) and tn >= 256:
        tn = _round_up(_round_up(d_out, 128) // 2, 128)
    Kp = _round_up(d_in, tk)
    Np = _round_up(d_out, tn)
    r_pad = max(128, _round_up(r, 128))

    wt = jnp.zeros((Kp, Np), dtype=compute_dtype)
    wt = wt.at[:d_in, :d_out].set(weight.T.astype(compute_dtype))
    at = jnp.zeros((d_in, r_pad), dtype=compute_dtype)
    at = at.at[:, :r].set(A.T.astype(compute_dtype))
    bt = jnp.zeros((r_pad, Np), dtype=compute_dtype)
    bt = bt.at[:r, :d_out].set((alpha * B.astype(jnp.float32)).T
                               .astype(compute_dtype))
    bias2d = jnp.zeros((1, Np), dtype=jnp.float32)
    if bias is not None:
        bias2d = bias2d.at[0, :d_out].set(bias.astype(jnp.float32))

    # TODO(synk): optional fp8 quantization of the frozen W^T (v7x MXU) with
    # per-tile scales applied in the epilogue.
    return LoRAParams(wt=wt, bias2d=bias2d, at=at, bt=bt,
                      d_in=d_in, d_out=d_out, tk=tk, tn=tn)


# -----------------------------------------------------------------------------
# Per-call wrapper
# -----------------------------------------------------------------------------
def lora_linear(x, params: LoRAParams, *, tm=512,
                vmem_limit_bytes: Optional[int] = None, w_buffers: int = 2):
    """x: (..., in_features) -> (..., out_features), fused LoRA linear."""
    *lead, d_in = x.shape
    assert d_in == params.d_in, "weight / input feature mismatch"
    d_out, tk, tn = params.d_out, params.tk, params.tn
    Kp, Np = params.wt.shape
    r_pad = params.at.shape[1]
    compute_dtype = params.wt.dtype
    out_dtype = x.dtype

    x2d = x.reshape(-1, d_in).astype(compute_dtype)
    M = x2d.shape[0]

    # Hoisted skinny matmul u = x @ A^T (lane-padded to 128): essentially free
    # as a plain XLA matmul, and it removes the degenerate-N pass from the
    # kernel's MXU critical path.
    u = jnp.dot(x2d, params.at,
                preferred_element_type=jnp.float32).astype(compute_dtype)

    # Only the activations are padded per call (frozen tensors already padded).
    tm = min(tm, _round_up(M, 8))
    Mp = _round_up(M, tm)
    if (Mp, Kp) != (M, d_in):
        x2d = jnp.pad(x2d, ((0, Mp - M), (0, Kp - d_in)))
    if Mp != M:
        u = jnp.pad(u, ((0, Mp - M), (0, 0)))

    grid = (Mp // tm, Np // tn, Kp // tk)

    needs_acc = out_dtype != jnp.float32
    kernel = _lora_kernel_acc if needs_acc else _lora_kernel_f32_out
    scratch = [pltpu.VMEM((tm, tn), jnp.float32)] if needs_acc else []

    if vmem_limit_bytes is None:
        # Right-size the scoped VMEM limit: double-buffered blocks + scratch.
        in_b = jnp.dtype(compute_dtype).itemsize
        out_b = jnp.dtype(out_dtype).itemsize
        blocks = (tm * tk * in_b + tk * tn * in_b + tn * 4
                  + tm * r_pad * in_b + r_pad * tn * in_b + tm * tn * out_b)
        est = 2 * blocks + (tm * tn * 4 if needs_acc else 0)
        vmem_limit_bytes = min(int(est * 1.25) + (2 << 20), 96 * 1024 * 1024)

    w_spec_kwargs = {}
    if w_buffers and w_buffers > 2:
        # Deeper pipelining on the W^T stream (small-M / decode on v5e).
        w_spec_kwargs["pipeline_mode"] = pl.Buffered(w_buffers)

    out2d = pl.pallas_call(
        kernel,
        out_shape=jax.ShapeDtypeStruct((Mp, Np), out_dtype),
        grid_spec=pltpu.PrefetchScalarGridSpec(
            num_scalar_prefetch=0,
            grid=grid,
            in_specs=[
                pl.BlockSpec((tm, tk), lambda i, j, k: (i, k)),        # x
                pl.BlockSpec((tk, tn), lambda i, j, k: (k, j),         # W^T
                             **w_spec_kwargs),
                pl.BlockSpec((1, tn), lambda i, j, k: (0, j)),         # bias
                pl.BlockSpec((tm, r_pad), lambda i, j, k: (i, 0)),     # u = x@A^T
                pl.BlockSpec((r_pad, tn), lambda i, j, k: (0, j)),     # (alpha*B)^T
            ],
            out_specs=pl.BlockSpec((tm, tn), lambda i, j, k: (i, j)),
            scratch_shapes=scratch,
        ),
        compiler_params=pltpu.CompilerParams(
            dimension_semantics=("parallel", "parallel", "arbitrary"),
            vmem_limit_bytes=vmem_limit_bytes,
        ),
    )(x2d, params.wt, params.bias2d, u, params.bt)

    return out2d[:M, :d_out].reshape(*lead, d_out)


def lora_linear_ref(x, weight, bias, A, B, *, alpha=1.0):
    """Pure-JAX reference matching the PyTorch forward."""
    original = jnp.einsum("...i,oi->...o", x, weight)
    if bias is not None:
        original = original + bias
    upd = jnp.einsum("...i,ri->...r", x, A)
    upd = jnp.einsum("...r,or->...o", upd, B)
    return original + alpha * upd


if __name__ == "__main__":
    key = jax.random.PRNGKey(0)

    # ---- Test 1: small module-consistent shapes, f32 strict ----------------
    batch, seq = 2, 8
    in_features, out_features, r = 32, 64, 4
    alpha = 1.0

    kx, kw, kb, ka, kB = jax.random.split(key, 5)
    x = jax.random.normal(kx, (batch, seq, in_features), jnp.float32)
    weight = jax.random.normal(kw, (out_features, in_features), jnp.float32) * 0.1
    bias = jax.random.normal(kb, (out_features,), jnp.float32) * 0.1
    A = jax.random.normal(ka, (r, in_features), jnp.float32) * 0.01
    B = jax.random.normal(kB, (out_features, r), jnp.float32) * 0.01

    params_f32 = prepare_lora_params(weight, bias, A, B, alpha=alpha,
                                     compute_dtype=jnp.float32)
    out = jax.block_until_ready(lora_linear(x, params_f32))
    ref = lora_linear_ref(x, weight, bias, A, B, alpha=alpha)
    assert out.shape == (batch, seq, out_features)
    assert jnp.allclose(out, ref, atol=1e-5, rtol=1e-5), "f32 mismatch vs reference"

    # ---- Test 2: ragged / multi-tile path (M, N, K tiling + padding) -------
    batch2, seq2 = 2, 65                 # M = 130 (ragged vs tm=64)
    d_in2, d_out2, r2 = 300, 256, 4
    alpha2 = 0.5
    k2 = jax.random.PRNGKey(1)
    kx2, kw2, kb2, ka2, kB2 = jax.random.split(k2, 5)
    x2 = jax.random.normal(kx2, (batch2, seq2, d_in2), jnp.float32)
    w2 = jax.random.normal(kw2, (d_out2, d_in2), jnp.float32) * 0.05
    b2 = jax.random.normal(kb2, (d_out2,), jnp.float32) * 0.1
    A2 = jax.random.normal(ka2, (r2, d_in2), jnp.float32) * 0.01
    B2 = jax.random.normal(kB2, (d_out2, r2), jnp.float32) * 0.01

    params2 = prepare_lora_params(w2, b2, A2, B2, alpha=alpha2,
                                  compute_dtype=jnp.float32, tn=128, tk=128)
    out2 = jax.block_until_ready(lora_linear(x2, params2, tm=64))
    ref2 = lora_linear_ref(x2, w2, b2, A2, B2, alpha=alpha2)
    assert out2.shape == (batch2, seq2, d_out2)
    assert jnp.allclose(out2, ref2, atol=1e-4, rtol=1e-4), "tiled mismatch vs reference"

    # ---- Test 3: bf16 weights + bf16 activations (f32-scratch path) --------
    params_bf16 = prepare_lora_params(weight, bias, A, B, alpha=alpha)  # bf16 default
    x_bf16 = x.astype(jnp.bfloat16)
    out3 = jax.block_until_ready(lora_linear(x_bf16, params_bf16))
    assert out3.dtype == jnp.bfloat16
    assert out3.shape == (batch, seq, out_features)
    assert jnp.allclose(out3.astype(jnp.float32), ref, atol=5e-2, rtol=5e-2), \
        "bf16 mismatch vs reference"

    # ---- Test 4: no-bias path ------------------------------------------------
    params_nb = prepare_lora_params(weight, None, A, B, alpha=alpha,
                                    compute_dtype=jnp.float32)
    out4 = jax.block_until_ready(lora_linear(x, params_nb))
    ref4 = lora_linear_ref(x, weight, None, A, B, alpha=alpha)
    assert jnp.allclose(out4, ref4, atol=1e-5, rtol=1e-5), "no-bias mismatch vs reference"

    print("KERNEL_OK")
</pallas_src>

<mosaic_0001>
module attributes {stable_mosaic.version = 11 : i64} {
  func.func @_lora_kernel_f32_out(%arg0: i32, %arg1: i32, %arg2: i32, %arg3: memref<16x128xf32, #tpu.memory_space<vmem>>, %arg4: memref<128x128xf32, #tpu.memory_space<vmem>>, %arg5: memref<1x128xf32, #tpu.memory_space<vmem>>, %arg6: memref<16x128xf32, #tpu.memory_space<vmem>>, %arg7: memref<128x128xf32, #tpu.memory_space<vmem>>, %arg8: memref<16x128xf32, #tpu.memory_space<vmem>>) attributes {dimension_semantics = [#tpu.dimension_semantics<parallel>, #tpu.dimension_semantics<parallel>, #tpu.dimension_semantics<arbitrary>], iteration_bounds = array<i64: 1, 1, 1>, scalar_prefetch = 0 : i64, scratch_operands = 0 : i64, tpu.core_type = #tpu.core_type<tc>, window_params = [{transform_indices = @transform_0, window_bounds = array<i64: 16, 128>}, {transform_indices = @transform_1, window_bounds = array<i64: 128, 128>}, {transform_indices = @transform_2, window_bounds = array<i64: 1, 128>}, {transform_indices = @transform_3, window_bounds = array<i64: 16, 128>}, {transform_indices = @transform_4, window_bounds = array<i64: 128, 128>}, {transform_indices = @transform_5, window_bounds = array<i64: 16, 128>}]} {
    %c0_i32 = arith.constant 0 : i32
    %0 = arith.cmpi eq, %arg2, %c0_i32 : i32
    %1 = arith.extui %0 : i1 to i32
    %c0_i32_0 = arith.constant 0 : i32
    %2 = arith.cmpi ne, %1, %c0_i32_0 : i32
    scf.if %2 {
      %cst_10 = arith.constant 0.000000e+00 : f32
      %12 = vector.broadcast %cst_10 : f32 to vector<16x128xf32>
      %c0_11 = arith.constant 0 : index
      %c0_12 = arith.constant 0 : index
      %13 = vector.load %arg8[%c0_11, %c0_12] : memref<16x128xf32, #tpu.memory_space<vmem>>, vector<16x128xf32>
      tpu.vector_store %arg8[%c0_11, %c0_12], %12 {strides = array<i32>} : memref<16x128xf32, #tpu.memory_space<vmem>>, vector<16x128xf32>,
    } else {
    }
    %c0 = arith.constant 0 : index
    %c0_1 = arith.constant 0 : index
    %3 = vector.load %arg8[%c0, %c0_1] : memref<16x128xf32, #tpu.memory_space<vmem>>, vector<16x128xf32>
    %c0_2 = arith.constant 0 : index
    %c0_3 = arith.constant 0 : index
    %4 = vector.load %arg3[%c0_2, %c0_3] : memref<16x128xf32, #tpu.memory_space<vmem>>, vector<16x128xf32>
    %c0_4 = arith.constant 0 : index
    %c0_5 = arith.constant 0 : index
    %5 = vector.load %arg4[%c0_4, %c0_5] : memref<128x128xf32, #tpu.memory_space<vmem>>, vector<128x128xf32>
    %cst = arith.constant dense<0.000000e+00> : vector<16x128xf32>
    %6 = tpu.matmul %4, %5, %cst {dimension_numbers = #tpu.dot_dimension_numbers<[1], [0], [0], [1], [0, 0, 1, 1], [], []>} : vector<16x128xf32>, vector<128x128xf32>, vector<16x128xf32> -> vector<16x128xf32>
    %7 = arith.addf %3, %6 : vector<16x128xf32>
    %c0_6 = arith.constant 0 : index
    %c0_7 = arith.constant 0 : index
    %8 = vector.load %arg8[%c0_6, %c0_7] : memref<16x128xf32, #tpu.memory_space<vmem>>, vector<16x128xf32>
    tpu.vector_store %arg8[%c0_6, %c0_7], %7 {strides = array<i32>} : memref<16x128xf32, #tpu.memory_space<vmem>>, vector<16x128xf32>,
    %c0_i32_8 = arith.constant 0 : i32
    %9 = arith.cmpi eq, %arg2, %c0_i32_8 : i32
    %10 = arith.extui %9 : i1 to i32
    %c0_i32_9 = arith.constant 0 : i32
    %11 = arith.cmpi ne, %10, %c0_i32_9 : i32
    scf.if %11 {
      %c0_10 = arith.constant 0 : index
      %c0_11 = arith.constant 0 : index
      %12 = vector.load %arg8[%c0_10, %c0_11] : memref<16x128xf32, #tpu.memory_space<vmem>>, vector<16x128xf32>
      %c0_12 = arith.constant 0 : index
      %c0_13 = arith.constant 0 : index
      %13 = vector.load %arg5[%c0_12, %c0_13] : memref<1x128xf32, #tpu.memory_space<vmem>>, vector<1x128xf32>
      %c0_14 = arith.constant 0 : index
      %c0_15 = arith.constant 0 : index
      %14 = vector.load %arg6[%c0_14, %c0_15] : memref<16x128xf32, #tpu.memory_space<vmem>>, vector<16x128xf32>
      %c0_16 = arith.constant 0 : index
      %c0_17 = arith.constant 0 : index
      %15 = vector.load %arg7[%c0_16, %c0_17] : memref<128x128xf32, #tpu.memory_space<vmem>>, vector<128x128xf32>
      %cst_18 = arith.constant dense<0.000000e+00> : vector<16x128xf32>
      %16 = tpu.matmul %14, %15, %cst_18 {dimension_numbers = #tpu.dot_dimension_numbers<[1], [0], [0], [1], [0, 0, 1, 1], [], []>} : vector<16x128xf32>, vector<128x128xf32>, vector<16x128xf32> -> vector<16x128xf32>
      %17 = vector.broadcast %13 : vector<1x128xf32> to vector<16x128xf32>
      %18 = arith.addf %17, %16 : vector<16x128xf32>
      %19 = arith.addf %12, %18 : vector<16x128xf32>
      %c0_19 = arith.constant 0 : index
      %c0_20 = arith.constant 0 : index
      %20 = vector.load %arg8[%c0_19, %c0_20] : memref<16x128xf32, #tpu.memory_space<vmem>>, vector<16x128xf32>
      tpu.vector_store %arg8[%c0_19, %c0_20], %19 {strides = array<i32>} : memref<16x128xf32, #tpu.memory_space<vmem>>, vector<16x128xf32>,
    } else {
    }
    return
  }
  func.func @transform_0(%arg0: i32, %arg1: i32, %arg2: i32) -> (i32, i32) {
    %c0_i32 = arith.constant 0 : i32
    return %arg0, %arg2 : i32, i32
  }
  func.func @transform_1(%arg0: i32, %arg1: i32, %arg2: i32) -> (i32, i32) {
    %c0_i32 = arith.constant 0 : i32
    return %arg2, %arg1 : i32, i32
  }
  func.func @transform_2(%arg0: i32, %arg1: i32, %arg2: i32) -> (i32, i32) {
    %c0_i32 = arith.constant 0 : i32
    %c0_i32_0 = arith.constant 0 : i32
    return %c0_i32, %arg1 : i32, i32
  }
  func.func @transform_3(%arg0: i32, %arg1: i32, %arg2: i32) -> (i32, i32) {
    %c0_i32 = arith.constant 0 : i32
    %c0_i32_0 = arith.constant 0 : i32
    return %arg0, %c0_i32 : i32, i32
  }
  func.func @transform_4(%arg0: i32, %arg1: i32, %arg2: i32) -> (i32, i32) {
    %c0_i32 = arith.constant 0 : i32
    %c0_i32_0 = arith.constant 0 : i32
    return %c0_i32, %arg1 : i32, i32
  }
  func.func @transform_5(%arg0: i32, %arg1: i32, %arg2: i32) -> (i32, i32) {
    %c0_i32 = arith.constant 0 : i32
    return %arg0, %arg1 : i32, i32
  }
}

</mosaic_0001>

<llo_original>
// kernel: tpu_custom_call.1
$region0: #{tpu_custom_call.1}
  #allocation0 [shape = 'u32[]', space=smem, size = 0x4, offset = 0x4, fixed_abs, tag = 'smem constant byte address 0x4 - core index']
  #allocation1 [shape = 'u32[72,128]{1,0:T(1,128)}', space=vmem, size = 0x9000, scoped, tag = 'internal scratch']
  %s0 = inlined_call_operand.hbm [shape: f32[16,128], index: 0, kind: input, shape index: {}]
  %s1 = inlined_call_operand.hbm [shape: f32[128,128], index: 1, kind: input, shape index: {}]
  %s2 = inlined_call_operand.vmem [shape: f32[1,128], index: 2, kind: input, shape index: {}]
  %s3 = inlined_call_operand.hbm [shape: f32[16,128], index: 3, kind: input, shape index: {}]
  %s4 = inlined_call_operand.hbm [shape: f32[128,128], index: 4, kind: input, shape index: {}]
  %s5 = inlined_call_operand.hbm [shape: f32[16,128], index: 5, kind: output, shape index: {}]
  %s6 = sld [smem:[#allocation0]]
  $region54: #{tpu_custom_call.1} parent=0
    _
  %s8 = ssub.s32 1, %s6
  %s9 = scalar_select 0, %s8, %s6
  $region1: #{tpu_custom_call.1} parent=0
    #allocation2 [shape = 'u8[8192]{0}', space=vmem, size = 0x2000, scoped, tag = 'input window, operand 0, single buffered']
    #allocation3 [shape = 's32[1]{0}', space=sflag, size = 0x4, scoped, tag = 'scoped memory for tpu_custom_call.1']
    #allocation4 [shape = 's32[1]{0}', space=sflag, size = 0x4, scoped, tag = 'scoped memory for tpu_custom_call.1']
    #allocation5 [shape = 'u8[65536]{0}', space=vmem, size = 0x10000, scoped, tag = 'input window, operand 1, single buffered']
    #allocation6 [shape = 's32[1]{0}', space=sflag, size = 0x4, scoped, tag = 'scoped memory for tpu_custom_call.1']
    #allocation7 [shape = 'u8[8192]{0}', space=vmem, size = 0x2000, scoped, tag = 'input window, operand 3, single buffered']
    #allocation8 [shape = 'u8[65536]{0}', space=vmem, size = 0x10000, scoped, tag = 'input window, operand 4, single buffered']
    #allocation9 [shape = 's32[1]{0}', space=sflag, size = 0x4, scoped, tag = 'scoped memory for tpu_custom_call.1']
    #allocation10 [shape = 'u8[8192]{0}', space=vmem, size = 0x2000, scoped, tag = 'output window, operand 0, single buffered']
    %10 = vsyncpa [#allocation3], 0
    %11 = vsyncpa [#allocation6], 0
    %12 = vsyncpa [#allocation9], 0
    %13 = vsyncpa [#allocation4], 0
    // Predicated region
    $region2: #{tpu_custom_call.1} parent=1 // pred_check
      _
    $region3: #{tpu_custom_call.1} parent=1 // pred_check_branch
      %15 = sbr.rel (0) target = $region5
    $region4: #{tpu_custom_call.1} parent=1 // pred_region
      %17 = vsyncadd [#allocation3], 0
      %s18 = sshll.u32 %s0, 4
      %s19 = int_to_ptr.hbm [resolvable:$true] %s18
      %s20 = sshll.u32 [#allocation2], 4
      %s21 = int_to_ptr.vmem [resolvable:$true] %s20
      %26 = dma.hbm_to_vmem [thread:$0]  %s19, 256, %s21, [#allocation3], 128, 128, 8
    $region5: #{tpu_custom_call.1} parent=1 // pred_fallthru
      _
    // Predicated region
    $region6: #{tpu_custom_call.1} parent=1 // pred_check
      _
    $region7: #{tpu_custom_call.1} parent=1 // pred_check_branch
      %28 = sbr.rel (0) target = $region9
    $region8: #{tpu_custom_call.1} parent=1 // pred_region
      %30 = vsyncadd [#allocation6], 0
      %s31 = sshll.u32 %s1, 4
      %s32 = int_to_ptr.hbm [resolvable:$true] %s31
      %s33 = sshll.u32 [#allocation5], 4
      %s34 = int_to_ptr.vmem [resolvable:$true] %s33
      %39 = dma.hbm_to_vmem [thread:$0]  %s32, 2048, %s34, [#allocation6], 128, 128, 8
    $region9: #{tpu_custom_call.1} parent=1 // pred_fallthru
      _
    // Predicated region
    $region10: #{tpu_custom_call.1} parent=1 // pred_check
      _
    $region11: #{tpu_custom_call.1} parent=1 // pred_check_branch
      %41 = sbr.rel (0) target = $region13
    $region12: #{tpu_custom_call.1} parent=1 // pred_region
      _
    $region13: #{tpu_custom_call.1} parent=1 // pred_fallthru
      _
    // Predicated region
    $region14: #{tpu_custom_call.1} parent=1 // pred_check
      _
    $region15: #{tpu_custom_call.1} parent=1 // pred_check_branch
      %43 = sbr.rel (0) target = $region17
    $region16: #{tpu_custom_call.1} parent=1 // pred_region
      %45 = vsyncadd [#allocation6], 0
      %s46 = sshll.u32 %s3, 4
      %s47 = int_to_ptr.hbm [resolvable:$true] %s46
      %s48 = sshll.u32 [#allocation7], 4
      %s49 = int_to_ptr.vmem [resolvable:$true] %s48
      %54 = dma.hbm_to_vmem [thread:$0]  %s47, 256, %s49, [#allocation6], 128, 128, 8
    $region17: #{tpu_custom_call.1} parent=1 // pred_fallthru
      _
    // Predicated region
    $region18: #{tpu_custom_call.1} parent=1 // pred_check
      _
    $region19: #{tpu_custom_call.1} parent=1 // pred_check_branch
      %56 = sbr.rel (0) target = $region21
    $region20: #{tpu_custom_call.1} parent=1 // pred_region
      %58 = vsyncadd [#allocation9], 0
      %s59 = sshll.u32 %s4, 4
      %s60 = int_to_ptr.hbm [resolvable:$true] %s59
      %s61 = sshll.u32 [#allocation8], 4
      %s62 = int_to_ptr.vmem [resolvable:$true] %s61
      %67 = dma.hbm_to_vmem [thread:$0]  %s60, 2048, %s62, [#allocation9], 128, 128, 8
    $region21: #{tpu_custom_call.1} parent=1 // pred_fallthru
      _
    // Predicated region
    $region22: #{tpu_custom_call.1} parent=1 // pred_check
      _
    $region23: #{tpu_custom_call.1} parent=1 // pred_check_branch
      %69 = sbr.rel (0) target = $region25
    $region24: #{tpu_custom_call.1} parent=1 // pred_region
      %71 = dma.done [#allocation3], 256
    $region25: #{tpu_custom_call.1} parent=1 // pred_fallthru
      _
    // Predicated region
    $region26: #{tpu_custom_call.1} parent=1 // pred_check
      _
    $region27: #{tpu_custom_call.1} parent=1 // pred_check_branch
      %73 = sbr.rel (0) target = $region29
    $region28: #{tpu_custom_call.1} parent=1 // pred_region
      %75 = dma.done [#allocation6], 2048
    $region29: #{tpu_custom_call.1} parent=1 // pred_fallthru
      _
    // Predicated region
    $region30: #{tpu_custom_call.1} parent=1 // pred_check
      _
    $region31: #{tpu_custom_call.1} parent=1 // pred_check_branch
      %77 = sbr.rel (0) target = $region33
    $region32: #{tpu_custom_call.1} parent=1 // pred_region
      %79 = dma.done [#allocation6], 256
    $region33: #{tpu_custom_call.1} parent=1 // pred_fallthru
      _
    // Predicated region
    $region34: #{tpu_custom_call.1} parent=1 // pred_check
      _
    $region35: #{tpu_custom_call.1} parent=1 // pred_check_branch
      %81 = sbr.rel (0) target = $region37
    $region36: #{tpu_custom_call.1} parent=1 // pred_region
      %83 = dma.done [#allocation9], 2048
    $region37: #{tpu_custom_call.1} parent=1 // pred_fallthru
      _
    %p84 = scmp.eq.s32.totalorder 0, 0
    // Predicated region
    $region38: #{tpu_custom_call.1} parent=1 // pred_check
      %p85 = pneg %p84
    $region39: #{tpu_custom_call.1} parent=1 // pred_check_branch
      %87 = sbr.rel (%p85) target = $region41
    $region40: #{tpu_custom_call.1} parent=1 // pred_region
      %88 = vst [vmem:[#allocation10] sm:$0xff] 0.0
      %89 = vst [vmem:[#allocation10 + $0x8] sm:$0xff] 0.0
    $region41: #{tpu_custom_call.1} parent=1 // pred_fallthru
      _
    %v90 = vld [vmem:[#allocation10] sm:$0xff]
    %v91 = vld [vmem:[#allocation10 + $0x8] sm:$0xff]
    %v92 = vld [vmem:[#allocation2] sm:$0xff]
    %v93 = vld [vmem:[#allocation2 + $0x8] sm:$0xff]
    %v94 = vld [vmem:[#allocation5] sm:$0xff]
    %v95 = vld [vmem:[#allocation5 + $0x8] sm:$0xff]
    %v96 = vld [vmem:[#allocation5 + $0x10] sm:$0xff]
    %v97 = vld [vmem:[#allocation5 + $0x18] sm:$0xff]
    %v98 = vld [vmem:[#allocation5 + $0x20] sm:$0xff]
    %v99 = vld [vmem:[#allocation5 + $0x28] sm:$0xff]
    %v100 = vld [vmem:[#allocation5 + $0x30] sm:$0xff]
    %v101 = vld [vmem:[#allocation5 + $0x38] sm:$0xff]
    %v102 = vld [vmem:[#allocation5 + $0x40] sm:$0xff]
    %v103 = vld [vmem:[#allocation5 + $0x48] sm:$0xff]
    %v104 = vld [vmem:[#allocation5 + $0x50] sm:$0xff]
    %v105 = vld [vmem:[#allocation5 + $0x58] sm:$0xff]
    %v106 = vld [vmem:[#allocation5 + $0x60] sm:$0xff]
    %v107 = vld [vmem:[#allocation5 + $0x68] sm:$0xff]
    %v108 = vld [vmem:[#allocation5 + $0x70] sm:$0xff]
    %v109 = vld [vmem:[#allocation5 + $0x78] sm:$0xff]
    %110 = vmatpush.msra.mxu0 %v109
    %111 = vmatpush.msra.mxu0 %v108
    %112 = vmatpush.msra.mxu0 %v107
    %113 = vmatpush.msra.mxu0 %v106
    %114 = vmatpush.msra.mxu0 %v105
    %115 = vmatpush.msra.mxu0 %v104
    %116 = vmatpush.msra.mxu0 %v103
    %117 = vmatpush.msra.mxu0 %v102
    %118 = vmatpush.msra.mxu0 %v101
    %119 = vmatpush.msra.mxu0 %v100
    %120 = vmatpush.msra.mxu0 %v99
    %121 = vmatpush.msra.mxu0 %v98
    %122 = vmatpush.msra.mxu0 %v97
    %123 = vmatpush.msra.mxu0 %v96
    %124 = vmatpush.msra.mxu0 %v95
    %125 = vmatpush.msra.mxu0 %v94
    %126 = vmatmul.f32.gmra.mxu0 %v92
    %v127 = vpop.f32.mrf.mxu0
    %v128 = vadd.f32 0.0, %v127
    %129 = vmatmul.f32.gmra.mxu0 %v93
    %v130 = vpop.f32.mrf.mxu0
    %v131 = vadd.f32 0.0, %v130
    %132 = vdwg.mxu0
    %v133 = vadd.f32 %v90, %v128
    %v134 = vadd.f32 %v91, %v131
    %135 = vst [vmem:[#allocation10] sm:$0xff] %v133
    %136 = vst [vmem:[#allocation10 + $0x8] sm:$0xff] %v134
    // Predicated region
    $region42: #{tpu_custom_call.1} parent=1 // pred_check
      %p137 = pneg %p84
    $region43: #{tpu_custom_call.1} parent=1 // pred_check_branch
      %139 = sbr.rel (%p137) target = $region45
    $region44: #{tpu_custom_call.1} parent=1 // pred_region
      %v140 = vld [vmem:[#allocation10] sm:$0xff]
      %v141 = vld [vmem:[#allocation10 + $0x8] sm:$0xff]
      %v142 = vld [vmem:[%s2] sm:$0x1]
      %v143 = vld [vmem:[#allocation7] sm:$0xff]
      %v144 = vld [vmem:[#allocation7 + $0x8] sm:$0xff]
      %v145 = vld [vmem:[#allocation8] sm:$0xff]
      %v146 = vld [vmem:[#allocation8 + $0x8] sm:$0xff]
      %v147 = vld [vmem:[#allocation8 + $0x10] sm:$0xff]
      %v148 = vld [vmem:[#allocation8 + $0x18] sm:$0xff]
      %v149 = vld [vmem:[#allocation8 + $0x20] sm:$0xff]
      %v150 = vld [vmem:[#allocation8 + $0x28] sm:$0xff]
      %v151 = vld [vmem:[#allocation8 + $0x30] sm:$0xff]
      %v152 = vld [vmem:[#allocation8 + $0x38] sm:$0xff]
      %v153 = vld [vmem:[#allocation8 + $0x40] sm:$0xff]
      %v154 = vld [vmem:[#allocation8 + $0x48] sm:$0xff]
      %v155 = vld [vmem:[#allocation8 + $0x50] sm:$0xff]
      %v156 = vld [vmem:[#allocation8 + $0x58] sm:$0xff]
      %v157 = vld [vmem:[#allocation8 + $0x60] sm:$0xff]
      %v158 = vld [vmem:[#allocation8 + $0x68] sm:$0xff]
      %v159 = vld [vmem:[#allocation8 + $0x70] sm:$0xff]
      %v160 = vld [vmem:[#allocation8 + $0x78] sm:$0xff]
      %161 = vmatpush.msra.mxu0 %v160
      %162 = vmatpush.msra.mxu0 %v159
      %163 = vmatpush.msra.mxu0 %v158
      %164 = vmatpush.msra.mxu0 %v157
      %165 = vmatpush.msra.mxu0 %v156
      %166 = vmatpush.msra.mxu0 %v155
      %167 = vmatpush.msra.mxu0 %v154
      %168 = vmatpush.msra.mxu0 %v153
      %169 = vmatpush.msra.mxu0 %v152
      %170 = vmatpush.msra.mxu0 %v151
      %171 = vmatpush.msra.mxu0 %v150
      %172 = vmatpush.msra.mxu0 %v149
      %173 = vmatpush.msra.mxu0 %v148
      %174 = vmatpush.msra.mxu0 %v147
      %175 = vmatpush.msra.mxu0 %v146
      %176 = vmatpush.msra.mxu0 %v145
      %177 = vmatmul.f32.gmra.mxu0 %v143
      %v178 = vpop.f32.mrf.mxu0
      %v179 = vadd.f32 0.0, %v178
      %180 = vmatmul.f32.gmra.mxu0 %v144
      %v181 = vpop.f32.mrf.mxu0
      %v182 = vadd.f32 0.0, %v181
      %183 = vdwg.mxu0
      %v185 = vperm.slane %v142, 0
      %v187 = vadd.f32 %v185, %v179
      %v188 = vadd.f32 %v185, %v182
      %v189 = vadd.f32 %v140, %v187
      %v190 = vadd.f32 %v141, %v188
      %191 = vst [vmem:[#allocation10] sm:$0xff] %v189
      %192 = vst [vmem:[#allocation10 + $0x8] sm:$0xff] %v190
    $region45: #{tpu_custom_call.1} parent=1 // pred_fallthru
      _
    // Predicated region
    $region46: #{tpu_custom_call.1} parent=1 // pred_check
      _
    $region47: #{tpu_custom_call.1} parent=1 // pred_check_branch
      %194 = sbr.rel (0) target = $region49
    $region48: #{tpu_custom_call.1} parent=1 // pred_region
      %196 = vsyncadd [#allocation4], 0
      %s197 = sshll.u32 [#allocation10], 4
      %s198 = int_to_ptr.vmem [resolvable:$true] %s197
      %s199 = sshll.u32 %s5, 4
      %s200 = int_to_ptr.hbm [resolvable:$true] %s199
      %205 = dma.vmem_to_hbm [thread:$0]  %s198, 256, %s200, [#allocation4], 128, 128, 8
    $region49: #{tpu_custom_call.1} parent=1 // pred_fallthru
      _
    // Predicated region
    $region50: #{tpu_custom_call.1} parent=1 // pred_check
      _
    $region51: #{tpu_custom_call.1} parent=1 // pred_check_branch
      %207 = sbr.rel (0) target = $region53
    $region52: #{tpu_custom_call.1} parent=1 // pred_region
      %209 = dma.done [#allocation4], 256
    $region53: #{tpu_custom_call.1} parent=1 // pred_fallthru
      _
    %210 = vsyncpa [#allocation3], 1
    %211 = vsyncpa [#allocation6], 1
    %212 = vsyncpa [#allocation9], 1
    %213 = vsyncpa [#allocation4], 1

</llo_original>
